<compile_context>
chip_gen: v5e
topology: v5e:2x2
jax: 0.10.0
libtpu: 0.0.40
codegen_flags: <defaults>
</compile_context>

<pallas_src>
import jax
import jax.numpy as jnp
import numpy as np
from jax.experimental import pallas as pl
from jax.experimental.pallas import tpu as pltpu

# ---- MN neuron constants (match the PyTorch module __init__) ----
C = 1.0
EL = -0.07
VR = -0.07
R1 = 0.0
R2 = 1.0
TR = -0.06
TINF = -0.05
B_CONST = 10.0
G = 50.0 * C
K1 = 200.0
K2 = 20.0
DT = 1.0 / 1000.0

# ---- Folded constants for the hot elementwise path ----
I1_DECAY = 1.0 - K1 * DT            # i1 *= (1 - k1*dt)
I2_DECAY = 1.0 - K2 * DT            # i2 *= (1 - k2*dt)
V_DECAY = 1.0 - DT * G / C          # V  *= (1 - dt*G/C)
DT_OVER_C = DT / C
V_LEAK = DT * G * EL / C            # + dt*G*EL/C
THR_DECAY = 1.0 - B_CONST * DT      # Thr *= (1 - b*dt)
THR_BIAS = DT * B_CONST * TINF      # + dt*b*Tinf


def _round_up(x, m):
    return (x + m - 1) // m * m


# ---------------------------------------------------------------------------
# Kernel 1: hoisted projection — one MXU matmul over all timesteps.
# (Shapes here are small; for production sizes use a tiled grid matmul.)
# ---------------------------------------------------------------------------
def _proj_kernel(x_ref, w_ref, o_ref):
    o_ref[...] = jnp.dot(x_ref[...], w_ref[...],
                         preferred_element_type=jnp.float32)


# ---------------------------------------------------------------------------
# Kernel 2: fused recurrent neuron dynamics. grid = (batch_blocks, T).
# State is held in the output VMEM blocks across the (arbitrary) T axis.
# ---------------------------------------------------------------------------
def _mn_recurrent_kernel(lin_ref, a_dt_ref, a1_ref, a2_ref,
                         v0_ref, i10_ref, i20_ref, thr0_ref,
                         spk_ref, v_ref, i1_ref, i2_ref, thr_ref):
    t = pl.program_id(1)

    @pl.when(t == 0)
    def _init():
        v_ref[...] = v0_ref[...]
        i1_ref[...] = i10_ref[...]
        i2_ref[...] = i20_ref[...]
        thr_ref[...] = thr0_ref[...]

    lin = lin_ref[0]                      # (BB, N)
    a_dt = a_dt_ref[...]                  # (1, N), pre-multiplied by dt
    A1 = a1_ref[...]
    A2 = a2_ref[...]

    V = v_ref[...]
    i1 = i1_ref[...] * I1_DECAY
    i2 = i2_ref[...] * I2_DECAY
    Thr = thr_ref[...]

    V = V * V_DECAY + DT_OVER_C * (lin + i1 + i2) + V_LEAK
    Thr = Thr * THR_DECAY + a_dt * (V - EL) + THR_BIAS

    fired = (V - Thr) > 0.0               # forward of SurrGradSpike

    spk_ref[0] = fired.astype(jnp.float32)
    i1_ref[...] = jnp.where(fired, A1, i1)          # R1 == 0  -> R1*i1 + A1 == A1
    i2_ref[...] = jnp.where(fired, i2 + A2, i2)     # R2 == 1  -> R2*i2 + A2 == i2 + A2
    thr_ref[...] = jnp.where(fired, jnp.maximum(Thr, TR), Thr)
    v_ref[...] = jnp.where(fired, VR, V)


# ---------------------------------------------------------------------------
# Wrapper
# ---------------------------------------------------------------------------
def mn_neuron_rollout(x_seq, w, a, A1, A2, V0, i1_0, i2_0, Thr0,
                      *, batch_block=256):
    """Run T timesteps of the MN neuron layer.

    x_seq: (T, B, n_in) f32
    w:     (n_in, n_out) f32   (transposed nn.Linear weight, no bias)
    a, A1, A2: (n_out,) or (1, n_out) f32
    V0, i1_0, i2_0, Thr0: (B, n_out) f32
    Returns (spk_seq (T,B,n_out), V, i1, i2, Thr) each f32.
    """
    f32 = jnp.float32
    T, B, n_in = x_seq.shape
    n_out = w.shape[1]

    N = _round_up(n_out, 128)                      # lane-dense outputs
    Bp = _round_up(B, 8)                           # sublane alignment
    BB = min(Bp, max(8, _round_up(batch_block, 8)))
    Bp = _round_up(Bp, BB)
    nb = Bp // BB

    def pad_param(p):
        p = jnp.asarray(p, f32).reshape(1, -1)
        return jnp.pad(p, ((0, 0), (0, N - n_out)))

    a_dt_p = pad_param(a) * DT                     # fold dt into a
    A1_p = pad_param(A1)
    A2_p = pad_param(A2)
    w_p = jnp.pad(jnp.asarray(w, f32), ((0, 0), (0, N - n_out)))
    x_p = jnp.pad(jnp.asarray(x_seq, f32), ((0, 0), (0, Bp - B), (0, 0)))

    def pad_state(s, fill):
        return jnp.pad(jnp.asarray(s, f32),
                       ((0, Bp - B), (0, N - n_out)), constant_values=fill)

    V_p = pad_state(V0, EL)
    i1_p = pad_state(i1_0, 0.0)
    i2_p = pad_state(i2_0, 0.0)
    Thr_p = pad_state(Thr0, TR)

    vmem = pl.BlockSpec(memory_space=pltpu.MemorySpace.VMEM)

    # ---- Hoisted projection: all T timesteps in one MXU matmul. ----
    lin = pl.pallas_call(
        _proj_kernel,
        out_shape=jax.ShapeDtypeStruct((T * Bp, N), f32),
        in_specs=[vmem, vmem],
        out_specs=vmem,
    )(x_p.reshape(T * Bp, n_in), w_p).reshape(T, Bp, N)

    # ---- Fused recurrence over T with state resident in VMEM. ----
    spec_seq = pl.BlockSpec((1, BB, N), lambda b, t: (t, b, 0))
    spec_par = pl.BlockSpec((1, N), lambda b, t: (0, 0))
    spec_st = pl.BlockSpec((BB, N), lambda b, t: (b, 0))

    out_shapes = (
        jax.ShapeDtypeStruct((T, Bp, N), f32),     # spk sequence
        jax.ShapeDtypeStruct((Bp, N), f32),        # V
        jax.ShapeDtypeStruct((Bp, N), f32),        # i1
        jax.ShapeDtypeStruct((Bp, N), f32),        # i2
        jax.ShapeDtypeStruct((Bp, N), f32),        # Thr
    )

    spk, V, i1, i2, Thr = pl.pallas_call(
        _mn_recurrent_kernel,
        grid=(nb, T),
        out_shape=out_shapes,
        in_specs=[spec_seq, spec_par, spec_par, spec_par,
                  spec_st, spec_st, spec_st, spec_st],
        out_specs=(spec_seq, spec_st, spec_st, spec_st, spec_st),
        compiler_params=pltpu.CompilerParams(
            dimension_semantics=("parallel", "arbitrary")),
    )(lin, a_dt_p, A1_p, A2_p, V_p, i1_p, i2_p, Thr_p)

    return (spk[:, :B, :n_out], V[:B, :n_out], i1[:B, :n_out],
            i2[:B, :n_out], Thr[:B, :n_out])


# ---------------------------------------------------------------------------
# Pure-JAX reference matching the PyTorch forward (per-step, unfolded).
# ---------------------------------------------------------------------------
def mn_rollout_ref(x_seq, w, a, A1, A2, V, i1, i2, Thr):
    a = jnp.asarray(a, jnp.float32).reshape(1, -1)
    A1 = jnp.asarray(A1, jnp.float32).reshape(1, -1)
    A2 = jnp.asarray(A2, jnp.float32).reshape(1, -1)
    spks = []
    for t in range(x_seq.shape[0]):
        lin = x_seq[t] @ w
        i1 = i1 + (-K1) * i1 * DT
        i2 = i2 + (-K2) * i2 * DT
        V = V + DT * (lin + i1 + i2 - G * (V - EL)) / C
        Thr = Thr + DT * (a * (V - EL) - B_CONST * (Thr - TINF))
        spk = (V - Thr > 0.0).astype(jnp.float32)
        i1 = (1 - spk) * i1 + spk * (R1 * i1 + A1)
        i2 = (1 - spk) * i2 + spk * (R2 * i2 + A2)
        Thr = (1 - spk) * Thr + spk * jnp.maximum(Thr, TR)
        V = (1 - spk) * V + spk * VR
        spks.append(spk)
    return jnp.stack(spks), V, i1, i2, Thr


if __name__ == "__main__":
    key = jax.random.PRNGKey(0)
    k_x, k_w = jax.random.split(key)

    T = 8
    batch = 8
    n_in = 16
    n_out = 32

    # Deterministic synthetic inputs / parameters.
    x_seq = jax.random.normal(k_x, (T, batch, n_in), dtype=jnp.float32)
    # nn.Linear(n_in, n_out, bias=False) weight has shape (n_out, n_in);
    # we store its transpose (n_in, n_out) for the kernel.
    w = (jax.random.normal(k_w, (n_out, n_in), dtype=jnp.float32)
         / jnp.sqrt(jnp.float32(n_in))).T

    a = jnp.ones((1, n_out), dtype=jnp.float32) * 5.0
    A1 = jnp.ones((1, n_out), dtype=jnp.float32) * 10.0
    A2 = jnp.ones((1, n_out), dtype=jnp.float32) * (-0.6)

    # Initial state (state is None on first call in the PyTorch module).
    V0 = jnp.ones((batch, n_out), dtype=jnp.float32) * EL
    i1_0 = jnp.zeros((batch, n_out), dtype=jnp.float32)
    i2_0 = jnp.zeros((batch, n_out), dtype=jnp.float32)
    Thr0 = jnp.ones((batch, n_out), dtype=jnp.float32) * TR

    spk, V, i1, i2, Thr = mn_neuron_rollout(
        x_seq, w, a, A1, A2, V0, i1_0, i2_0, Thr0)
    jax.block_until_ready((spk, V, i1, i2, Thr))

    spk_r, V_r, i1_r, i2_r, Thr_r = mn_rollout_ref(
        x_seq, w, a, A1, A2, V0, i1_0, i2_0, Thr0)

    np.testing.assert_allclose(np.asarray(spk), np.asarray(spk_r), atol=1e-6)
    np.testing.assert_allclose(np.asarray(V), np.asarray(V_r), rtol=1e-4, atol=1e-5)
    np.testing.assert_allclose(np.asarray(i1), np.asarray(i1_r), rtol=1e-4, atol=1e-5)
    np.testing.assert_allclose(np.asarray(i2), np.asarray(i2_r), rtol=1e-4, atol=1e-5)
    np.testing.assert_allclose(np.asarray(Thr), np.asarray(Thr_r), rtol=1e-4, atol=1e-5)

    print("KERNEL_OK")
</pallas_src>

<mosaic_0001>
module attributes {stable_mosaic.version = 11 : i64} {
  func.func @_proj_kernel(%arg0: memref<64x16xf32, #tpu.memory_space<vmem>>, %arg1: memref<16x128xf32, #tpu.memory_space<vmem>>, %arg2: memref<64x128xf32, #tpu.memory_space<vmem>>) attributes {dimension_semantics = [], scalar_prefetch = 0 : i64, scratch_operands = 0 : i64, tpu.core_type = #tpu.core_type<tc>} {
    %c0 = arith.constant 0 : index
    %c0_0 = arith.constant 0 : index
    %0 = vector.load %arg0[%c0, %c0_0] : memref<64x16xf32, #tpu.memory_space<vmem>>, vector<64x16xf32>
    %c0_1 = arith.constant 0 : index
    %c0_2 = arith.constant 0 : index
    %1 = vector.load %arg1[%c0_1, %c0_2] : memref<16x128xf32, #tpu.memory_space<vmem>>, vector<16x128xf32>
    %cst = arith.constant dense<0.000000e+00> : vector<64x128xf32>
    %2 = tpu.matmul %0, %1, %cst {dimension_numbers = #tpu.dot_dimension_numbers<[1], [0], [0], [1], [0, 0, 1, 1], [], []>} : vector<64x16xf32>, vector<16x128xf32>, vector<64x128xf32> -> vector<64x128xf32>
    %c0_3 = arith.constant 0 : index
    %c0_4 = arith.constant 0 : index
    %3 = vector.load %arg2[%c0_3, %c0_4] : memref<64x128xf32, #tpu.memory_space<vmem>>, vector<64x128xf32>
    tpu.vector_store %arg2[%c0_3, %c0_4], %2 {strides = array<i32>} : memref<64x128xf32, #tpu.memory_space<vmem>>, vector<64x128xf32>,
    return
  }
}

</mosaic_0001>

<llo_original>
// kernel: tpu_custom_call.1
$region0: #{tpu_custom_call.1}
  #allocation0 [shape = 'u32[]', space=smem, size = 0x4, offset = 0x4, fixed_abs, tag = 'smem constant byte address 0x4 - core index']
  #allocation1 [shape = 'u32[72,128]{1,0:T(1,128)}', space=vmem, size = 0x9000, scoped, tag = 'internal scratch']
  %s0 = inlined_call_operand.vmem [shape: f32[64,16], index: 0, kind: input, shape index: {}]
  %s1 = inlined_call_operand.vmem [shape: f32[16,128], index: 1, kind: input, shape index: {}]
  %s2 = inlined_call_operand.hbm [shape: f32[64,128], index: 2, kind: output, shape index: {}]
  %s3 = sld [smem:[#allocation0]]
  $region18: #{tpu_custom_call.1} parent=0
    _
  %s5 = ssub.s32 1, %s3
  %s6 = scalar_select 0, %s5, %s3
  $region1: #{tpu_custom_call.1} parent=0
    #allocation2 [shape = 'u8[32768]{0}', space=vmem, size = 0x8000, scoped, tag = 'output window, operand 0, single buffered']
    #allocation3 [shape = 's32[1]{0}', space=sflag, size = 0x4, scoped, tag = 'scoped memory for tpu_custom_call.1']
    %7 = vsyncpa [#allocation3], 0
    // Predicated region
    $region2: #{tpu_custom_call.1} parent=1 // pred_check
      _
    $region3: #{tpu_custom_call.1} parent=1 // pred_check_branch
      %9 = sbr.rel (0) target = $region5
    $region4: #{tpu_custom_call.1} parent=1 // pred_region
      _
    $region5: #{tpu_custom_call.1} parent=1 // pred_fallthru
      _
    // Predicated region
    $region6: #{tpu_custom_call.1} parent=1 // pred_check
      _
    $region7: #{tpu_custom_call.1} parent=1 // pred_check_branch
      %11 = sbr.rel (0) target = $region9
    $region8: #{tpu_custom_call.1} parent=1 // pred_region
      _
    $region9: #{tpu_custom_call.1} parent=1 // pred_fallthru
      _
    %v12 = vld [vmem:[%s0] sm:$0xff]
    %v13 = vld [vmem:[%s0 + $0x8] sm:$0xff]
    %v14 = vld [vmem:[%s0 + $0x10] sm:$0xff]
    %v15 = vld [vmem:[%s0 + $0x18] sm:$0xff]
    %v16 = vld [vmem:[%s0 + $0x20] sm:$0xff]
    %v17 = vld [vmem:[%s0 + $0x28] sm:$0xff]
    %v18 = vld [vmem:[%s0 + $0x30] sm:$0xff]
    %v19 = vld [vmem:[%s0 + $0x38] sm:$0xff]
    %v20 = vld [vmem:[%s1] sm:$0xff]
    %v21 = vld [vmem:[%s1 + $0x8] sm:$0xff]
    %vm22 = vcmask 130048
    %v24 = vsel %vm22, %v12, 0
    %v27 = vsel %vm22, %v13, 0
    %v30 = vsel %vm22, %v14, 0
    %v33 = vsel %vm22, %v15, 0
    %v36 = vsel %vm22, %v16, 0
    %v39 = vsel %vm22, %v17, 0
    %v42 = vsel %vm22, %v18, 0
    %v45 = vsel %vm22, %v19, 0
    %47 = vmatpush.msra.mxu0 0.0
    %48 = vmatpush.msra.mxu0 0.0
    %49 = vmatpush.msra.mxu0 0.0
    %50 = vmatpush.msra.mxu0 0.0
    %51 = vmatpush.msra.mxu0 0.0
    %52 = vmatpush.msra.mxu0 0.0
    %53 = vmatpush.msra.mxu0 0.0
    %54 = vmatpush.msra.mxu0 0.0
    %55 = vmatpush.msra.mxu0 0.0
    %56 = vmatpush.msra.mxu0 0.0
    %57 = vmatpush.msra.mxu0 0.0
    %58 = vmatpush.msra.mxu0 0.0
    %59 = vmatpush.msra.mxu0 0.0
    %60 = vmatpush.msra.mxu0 0.0
    %61 = vmatpush.msra.mxu0 %v21
    %62 = vmatpush.msra.mxu0 %v20
    %63 = vmatmul.f32.gmra.mxu0 %v24
    %v64 = vpop.f32.mrf.mxu0
    %v65 = vadd.f32 0.0, %v64
    %66 = vmatmul.f32.gmra.mxu0 %v27
    %v67 = vpop.f32.mrf.mxu0
    %v68 = vadd.f32 0.0, %v67
    %69 = vmatmul.f32.gmra.mxu0 %v30
    %v70 = vpop.f32.mrf.mxu0
    %v71 = vadd.f32 0.0, %v70
    %72 = vmatmul.f32.gmra.mxu0 %v33
    %v73 = vpop.f32.mrf.mxu0
    %v74 = vadd.f32 0.0, %v73
    %75 = vmatmul.f32.gmra.mxu0 %v36
    %v76 = vpop.f32.mrf.mxu0
    %v77 = vadd.f32 0.0, %v76
    %78 = vmatmul.f32.gmra.mxu0 %v39
    %v79 = vpop.f32.mrf.mxu0
    %v80 = vadd.f32 0.0, %v79
    %81 = vmatmul.f32.gmra.mxu0 %v42
    %v82 = vpop.f32.mrf.mxu0
    %v83 = vadd.f32 0.0, %v82
    %84 = vmatmul.f32.gmra.mxu0 %v45
    %v85 = vpop.f32.mrf.mxu0
    %v86 = vadd.f32 0.0, %v85
    %87 = vdwg.mxu0
    %88 = vst [vmem:[#allocation2] sm:$0xff] %v65
    %89 = vst [vmem:[#allocation2 + $0x8] sm:$0xff] %v68
    %90 = vst [vmem:[#allocation2 + $0x10] sm:$0xff] %v71
    %91 = vst [vmem:[#allocation2 + $0x18] sm:$0xff] %v74
    %92 = vst [vmem:[#allocation2 + $0x20] sm:$0xff] %v77
    %93 = vst [vmem:[#allocation2 + $0x28] sm:$0xff] %v80
    %94 = vst [vmem:[#allocation2 + $0x30] sm:$0xff] %v83
    %95 = vst [vmem:[#allocation2 + $0x38] sm:$0xff] %v86
    // Predicated region
    $region10: #{tpu_custom_call.1} parent=1 // pred_check
      _
    $region11: #{tpu_custom_call.1} parent=1 // pred_check_branch
      %97 = sbr.rel (0) target = $region13
    $region12: #{tpu_custom_call.1} parent=1 // pred_region
      %99 = vsyncadd [#allocation3], 0
      %s100 = sshll.u32 [#allocation2], 4
      %s101 = int_to_ptr.vmem [resolvable:$true] %s100
      %s102 = sshll.u32 %s2, 4
      %s103 = int_to_ptr.hbm [resolvable:$true] %s102
      %108 = dma.vmem_to_hbm [thread:$0]  %s101, 1024, %s103, [#allocation3], 128, 128, 8
    $region13: #{tpu_custom_call.1} parent=1 // pred_fallthru
      _
    // Predicated region
    $region14: #{tpu_custom_call.1} parent=1 // pred_check
      _
    $region15: #{tpu_custom_call.1} parent=1 // pred_check_branch
      %110 = sbr.rel (0) target = $region17
    $region16: #{tpu_custom_call.1} parent=1 // pred_region
      %112 = dma.done [#allocation3], 1024
    $region17: #{tpu_custom_call.1} parent=1 // pred_fallthru
      _
    %113 = vsyncpa [#allocation3], 1

</llo_original>
